<compile_context>
chip_gen: v7x
topology: tpu7x:2x2x1
jax: 0.10.0
libtpu: 0.0.40
codegen_flags: <defaults>
</compile_context>

<pallas_src>
import jax
import jax.numpy as jnp
from jax.experimental import pallas as pl
from jax.experimental.pallas import tpu as pltpu


# ----------------------------------------------------------------------------
# Kernel: one M-tile per grid step,  o = x_tile @ w
# ----------------------------------------------------------------------------
def _wfm_kernel(x_ref, w_ref, o_ref):
    o_ref[...] = jnp.dot(
        x_ref[...], w_ref[...], preferred_element_type=jnp.float32
    ).astype(o_ref.dtype)


# ----------------------------------------------------------------------------
# Wrapper: WeightedFeatureMaps.forward
# ----------------------------------------------------------------------------
def weighted_feature_maps(stacked_feature_maps, weight, *, tile_m=4096):
    """stacked_feature_maps: (..., k); weight: (decoder_depth, k) (PyTorch layout).

    Returns (..., decoder_depth) = stacked_feature_maps @ weight.T
    """
    *lead, k = stacked_feature_maps.shape
    d = weight.shape[0]
    w = weight.T  # (k, d): tiny, negligible wrapper cost

    m = 1
    for s in lead:
        m *= s
    x2 = stacked_feature_maps.reshape(m, k)  # pure view (k already contiguous)

    # Sublane-aligned row tile; pad M only if the grid does not divide evenly.
    tm = max(8, min(tile_m, m))
    tm = ((tm + 7) // 8) * 8
    m_pad = pl.cdiv(m, tm) * tm
    if m_pad != m:
        x2 = jnp.pad(x2, ((0, m_pad - m), (0, 0)))

    out = pl.pallas_call(
        _wfm_kernel,
        out_shape=jax.ShapeDtypeStruct((m_pad, d), stacked_feature_maps.dtype),
        grid=(m_pad // tm,),
        in_specs=[
            pl.BlockSpec((tm, k), lambda i: (i, 0)),   # pipelined M tiles
            pl.BlockSpec((k, d), lambda i: (0, 0)),    # weight resident in VMEM
        ],
        out_specs=pl.BlockSpec((tm, d), lambda i: (i, 0)),
        compiler_params=pltpu.CompilerParams(
            dimension_semantics=("parallel",)),
    )(x2, w)

    if m_pad != m:
        out = out[:m]
    return out.reshape(*lead, d)


# ----------------------------------------------------------------------------
# Pure-JAX reference (PyTorch semantics: F.linear(x, W) = x @ W.T, no bias)
# ----------------------------------------------------------------------------
def weighted_feature_maps_ref(stacked_feature_maps, weight):
    return jnp.einsum("...k,dk->...d", stacked_feature_maps, weight)


if __name__ == "__main__":
    # Small shapes consistent with the module: k stacked encoder feature maps
    # of shape (batch, seq, embed_dim), combined into decoder_depth maps.
    B, N, E = 2, 8, 32
    k = 4
    decoder_depth = 8

    key = jax.random.PRNGKey(0)
    k_x, k_w = jax.random.split(key, 2)
    stacked = jax.random.normal(k_x, (B, N, E, k), jnp.float32)
    weight = jax.random.normal(k_w, (decoder_depth, k), jnp.float32) * 0.1

    # tile_m=128 -> M=512 rows split into a 4-step pipelined grid.
    out = weighted_feature_maps(stacked, weight, tile_m=128)
    out = jax.block_until_ready(out)

    ref = weighted_feature_maps_ref(stacked, weight)
    assert out.shape == (B, N, E, decoder_depth)
    assert jnp.allclose(out, ref, atol=1e-4, rtol=1e-4)

    print("KERNEL_OK")
</pallas_src>

<mosaic_0001>
module attributes {stable_mosaic.version = 11 : i64} {
  func.func @_wfm_kernel(%arg0: i32, %arg1: memref<128x4xf32, #tpu.memory_space<vmem>>, %arg2: memref<4x8xf32, #tpu.memory_space<vmem>>, %arg3: memref<128x8xf32, #tpu.memory_space<vmem>>) attributes {dimension_semantics = [#tpu.dimension_semantics<parallel>], iteration_bounds = array<i64: 4>, scalar_prefetch = 0 : i64, scratch_operands = 0 : i64, tpu.core_type = #tpu.core_type<tc>, window_params = [{transform_indices = @transform_0, window_bounds = array<i64: 128, 4>}, {pipeline_mode = #tpu.pipeline_mode<synchronous>, transform_indices = @transform_1, window_bounds = array<i64: 4, 8>}, {transform_indices = @transform_2, window_bounds = array<i64: 128, 8>}]} {
    %c0 = arith.constant 0 : index
    %c0_0 = arith.constant 0 : index
    %0 = vector.load %arg1[%c0, %c0_0] : memref<128x4xf32, #tpu.memory_space<vmem>>, vector<128x4xf32>
    %c0_1 = arith.constant 0 : index
    %c0_2 = arith.constant 0 : index
    %1 = vector.load %arg2[%c0_1, %c0_2] : memref<4x8xf32, #tpu.memory_space<vmem>>, vector<4x8xf32>
    %cst = arith.constant dense<0.000000e+00> : vector<128x8xf32>
    %2 = tpu.matmul %0, %1, %cst {dimension_numbers = #tpu.dot_dimension_numbers<[1], [0], [0], [1], [0, 0, 1, 1], [], []>} : vector<128x4xf32>, vector<4x8xf32>, vector<128x8xf32> -> vector<128x8xf32>
    %c0_3 = arith.constant 0 : index
    %c0_4 = arith.constant 0 : index
    %3 = vector.load %arg3[%c0_3, %c0_4] : memref<128x8xf32, #tpu.memory_space<vmem>>, vector<128x8xf32>
    tpu.vector_store %arg3[%c0_3, %c0_4], %2 {strides = array<i32>} : memref<128x8xf32, #tpu.memory_space<vmem>>, vector<128x8xf32>,
    return
  }
  func.func @transform_0(%arg0: i32) -> (i32, i32) {
    %c0_i32 = arith.constant 0 : i32
    %c0_i32_0 = arith.constant 0 : i32
    return %arg0, %c0_i32 : i32, i32
  }
  func.func @transform_1(%arg0: i32) -> (i32, i32) {
    %c0_i32 = arith.constant 0 : i32
    %c0_i32_0 = arith.constant 0 : i32
    %c0_i32_1 = arith.constant 0 : i32
    return %c0_i32, %c0_i32_0 : i32, i32
  }
  func.func @transform_2(%arg0: i32) -> (i32, i32) {
    %c0_i32 = arith.constant 0 : i32
    %c0_i32_0 = arith.constant 0 : i32
    return %arg0, %c0_i32 : i32, i32
  }
}

</mosaic_0001>

<llo_original>
// kernel: tpu_custom_call.1
$region0: #{tpu_custom_call.1}
  #allocation0 [shape = 'u32[]', space=smem, size = 0x4, offset = 0x4, fixed_abs, tag = 'smem constant byte address 0x4 - core index']
  #allocation1 [shape = 'u32[144,128]{1,0:T(1,128)}', space=vmem, size = 0x12000, scoped, tag = 'internal scratch']
  %s0 = inlined_call_operand.vmem [shape: f32[512,4], index: 0, kind: input, shape index: {}]
  %s1 = inlined_call_operand.vmem [shape: f32[4,8], index: 1, kind: input, shape index: {}]
  %s2 = inlined_call_operand.vmem [shape: f32[512,8], index: 2, kind: output, shape index: {}]
  %s3 = sld [smem:[#allocation0]]
  $region41: #{tpu_custom_call.1} parent=0
    _
  %s5 = ssub.s32 1, %s3
  %s6 = scalar_select 0, %s5, %s3
  loop: start=0, step=1, limit=6
  $region2: #{tpu_custom_call.1} parent=0 // loop_pre_header
    _
  $region3: #{tpu_custom_call.1} parent=0 // loop_header
    %s8 = sphi 0, %s12
    %p9 = scmp.ge.s32.totalorder %s8, 6
    %s18 = sphi 0, %s20
    %s21 = sphi 0, %s18
    %s22 = sphi 0, %s21
    %s38 = sphi 0, %s22
    %s42 = sphi 0, %s42
    %s44 = sphi 0, %s42
    %s45 = sphi 0, %s44
    %s59 = sphi 0, %s45
    %s65 = sphi 0, %s67
    %s68 = sphi 0, %s65
    %s69 = sphi 0, %s68
    %s85 = sphi 0, %s69
  $region4: #{tpu_custom_call.1} parent=0 // loop_header_branch
    %11 = sbr.rel (%p9) target = $region8
  $region5: #{tpu_custom_call.1} parent=0 // loop_body
    %s13 = ssub.s32 %s8, 1
    %s14 = ssub.s32 %s8, 2
    %s15 = sadd.s32 %s8, 1
    %s16 = ssub.s32 %s8, %s15
    %p17 = scmp.eq.s32.totalorder %s16, 0
    %s19 = sadd.s32 %s18, 1
    %s20 = scalar_select %p17, %s18, %s19
    %p23 = pneg %p17
    %p24 = scmp.eq.s32.totalorder %s8, 3
    %p25 = por %p23, %p24
    %p26 = scmp.ne.s32.totalorder %s18, %s21
    %p27 = scmp.eq.s32.totalorder %s8, 0
    %p28 = por %p26, %p27
    %p29 = scmp.ne.s32.totalorder %s18, %s21
    %p30 = scmp.eq.s32.totalorder %s13, 3
    %p31 = por %p29, %p30
    %p32 = scmp.ne.s32.totalorder %s21, %s22
    %p33 = scmp.eq.s32.totalorder %s13, 0
    %p34 = por %p32, %p33
    %p35 = scmp.ne.s32.totalorder %s21, %s22
    %p36 = scmp.eq.s32.totalorder %s14, 3
    %p37 = por %p35, %p36
    %p39 = scmp.ne.s32.totalorder %s22, %s38
    %p40 = scmp.eq.s32.totalorder %s14, 0
    %p41 = por %p39, %p40
    %s43 = sadd.s32 %s42, 1
    %p46 = scmp.eq.s32.totalorder %s8, 3
    %p47 = scmp.ne.s32.totalorder %s42, %s44
    %p48 = scmp.eq.s32.totalorder %s8, 0
    %p49 = por %p47, %p48
    %p50 = scmp.ne.s32.totalorder %s42, %s44
    %p51 = scmp.eq.s32.totalorder %s13, 3
    %p52 = por %p50, %p51
    %p53 = scmp.ne.s32.totalorder %s44, %s45
    %p54 = scmp.eq.s32.totalorder %s13, 0
    %p55 = por %p53, %p54
    %p56 = scmp.ne.s32.totalorder %s44, %s45
    %p57 = scmp.eq.s32.totalorder %s14, 3
    %p58 = por %p56, %p57
    %p60 = scmp.ne.s32.totalorder %s45, %s59
    %p61 = scmp.eq.s32.totalorder %s14, 0
    %p62 = por %p60, %p61
    %s63 = ssub.s32 %s8, %s15
    %p64 = scmp.eq.s32.totalorder %s63, 0
    %s66 = sadd.s32 %s65, 1
    %s67 = scalar_select %p64, %s65, %s66
    %p70 = pneg %p64
    %p71 = scmp.eq.s32.totalorder %s8, 3
    %p72 = por %p70, %p71
    %p73 = scmp.ne.s32.totalorder %s65, %s68
    %p74 = scmp.eq.s32.totalorder %s8, 0
    %p75 = por %p73, %p74
    %p76 = scmp.ne.s32.totalorder %s65, %s68
    %p77 = scmp.eq.s32.totalorder %s13, 3
    %p78 = por %p76, %p77
    %p79 = scmp.ne.s32.totalorder %s68, %s69
    %p80 = scmp.eq.s32.totalorder %s13, 0
    %p81 = por %p79, %p80
    %p82 = scmp.ne.s32.totalorder %s68, %s69
    %p83 = scmp.eq.s32.totalorder %s14, 3
    %p84 = por %p82, %p83
    %p86 = scmp.ne.s32.totalorder %s69, %s85
    %p87 = scmp.eq.s32.totalorder %s14, 0
    %p88 = por %p86, %p87
    %p89 = scmp.le.s32.totalorder 1, %s8
    %p90 = scmp.lt.s32.totalorder %s8, 5
    %p91 = pnand %p89, %p90
    %p92 = pneg %p91
    // Predicated region
    $region9: #{tpu_custom_call.1} parent=5 // pred_check
      _
    $region10: #{tpu_custom_call.1} parent=5 // pred_check_branch
      %94 = sbr.rel (%p91) target = $region12
    $region11: #{tpu_custom_call.1} parent=5 // pred_region
      %s95 = ssub.s32 %s8, 1
      // Predicated region
      $region13: #{tpu_custom_call.1} parent=11 // pred_check
        %p96 = pneg %p55
      $region14: #{tpu_custom_call.1} parent=11 // pred_check_branch
        %98 = sbr.rel (%p96) target = $region16
      $region15: #{tpu_custom_call.1} parent=11 // pred_region
        _
      $region16: #{tpu_custom_call.1} parent=11 // pred_fallthru
        _
    $region12: #{tpu_custom_call.1} parent=5 // pred_fallthru
      _
    %p99 = scmp.lt.s32.totalorder %s8, 4
    // Predicated region
    $region17: #{tpu_custom_call.1} parent=5 // pred_check
      %p100 = pneg %p99
    $region18: #{tpu_custom_call.1} parent=5 // pred_check_branch
      %102 = sbr.rel (%p100) target = $region20
    $region19: #{tpu_custom_call.1} parent=5 // pred_region
      // Predicated region
      $region21: #{tpu_custom_call.1} parent=19 // pred_check
        %p103 = pneg %p28
      $region22: #{tpu_custom_call.1} parent=19 // pred_check_branch
        %105 = sbr.rel (%p103) target = $region24
      $region23: #{tpu_custom_call.1} parent=19 // pred_region
        %s106 = smul.u32 16, %s8
        %p107 = scmp.lt.s32.totalorder %s106, 63
        %s108 = scalar_select %p107, %s106, 63
        %s109 = smul.addr %s108, 8
        %s110 = scalar_lea.vmem %s0, %s109
        %s111 = smul.u32 16, %s8
      $region24: #{tpu_custom_call.1} parent=19 // pred_fallthru
        _
    $region20: #{tpu_custom_call.1} parent=5 // pred_fallthru
      _
    %p112 = scmp.le.s32.totalorder 1, %s8
    %p113 = scmp.lt.s32.totalorder %s8, 5
    %p114 = pnand %p112, %p113
    %p115 = pneg %p114
    // Predicated region
    $region25: #{tpu_custom_call.1} parent=5 // pred_check
      _
    $region26: #{tpu_custom_call.1} parent=5 // pred_check_branch
      %117 = sbr.rel (%p114) target = $region28
    $region27: #{tpu_custom_call.1} parent=5 // pred_region
      %s118 = ssub.s32 %s8, 1
      %s119 = smul.u32 16, %s13
      %p120 = scmp.lt.s32.totalorder %s119, 63
      %s121 = scalar_select %p120, %s119, 63
      %s122 = smul.addr %s121, 8
      %s123 = scalar_lea.vmem %s0, %s122
      %p124 = pneg %p34
      %p125 = pneg %p31
      %p126 = pneg %p55
      %p127 = pneg %p52
      %p128 = pneg %p81
      %p129 = pneg %p78
      %s130 = smul.u32 16, %s13
      %p131 = scmp.lt.s32.totalorder %s130, 63
      %s132 = scalar_select %p131, %s130, 63
      %s133 = smul.addr %s132, 8
      %s134 = scalar_lea.vmem %s2, %s133
      %s135 = smul.u32 16, %s13
      %p136 = scmp.lt.s32.totalorder %s135, 63
      %s137 = scalar_select %p136, %s135, 63
      %s138 = smul.addr %s137, 8
      %s139 = scalar_lea.vmem %s0, %s138
      %s140 = smul.u32 16, %s13
      %s141 = smul.u32 16, %s13
      %p142 = scmp.lt.s32.totalorder %s141, 63
      %s143 = scalar_select %p142, %s141, 63
      %s144 = smul.addr %s143, 8
      %s145 = scalar_lea.vmem %s2, %s144
      %s146 = smul.u32 16, %s13
      %v147 = vld [vmem:[%s139] sm:$0xff]
      %v148 = vld [vmem:[%s139 + $0x8] sm:$0xff]
      %v149 = vld [vmem:[%s139 + $0x10] sm:$0xff]
      %v150 = vld [vmem:[%s139 + $0x18] sm:$0xff]
      %v151 = vld [vmem:[%s139 + $0x20] sm:$0xff]
      %v152 = vld [vmem:[%s139 + $0x28] sm:$0xff]
      %v153 = vld [vmem:[%s139 + $0x30] sm:$0xff]
      %v154 = vld [vmem:[%s139 + $0x38] sm:$0xff]
      %v155 = vld [vmem:[%s139 + $0x40] sm:$0xff]
      %v156 = vld [vmem:[%s139 + $0x48] sm:$0xff]
      %v157 = vld [vmem:[%s139 + $0x50] sm:$0xff]
      %v158 = vld [vmem:[%s139 + $0x58] sm:$0xff]
      %v159 = vld [vmem:[%s139 + $0x60] sm:$0xff]
      %v160 = vld [vmem:[%s139 + $0x68] sm:$0xff]
      %v161 = vld [vmem:[%s139 + $0x70] sm:$0xff]
      %v162 = vld [vmem:[%s139 + $0x78] sm:$0xff]
      %v163 = vld [vmem:[%s1] sm:$0xf]
      %vm164 = vcmask 31744
      %v166 = vsel %vm164, %v147, 0
      %v169 = vsel %vm164, %v148, 0
      %v172 = vsel %vm164, %v149, 0
      %v175 = vsel %vm164, %v150, 0
      %v178 = vsel %vm164, %v151, 0
      %v181 = vsel %vm164, %v152, 0
      %v184 = vsel %vm164, %v153, 0
      %v187 = vsel %vm164, %v154, 0
      %v190 = vsel %vm164, %v155, 0
      %v193 = vsel %vm164, %v156, 0
      %v196 = vsel %vm164, %v157, 0
      %v199 = vsel %vm164, %v158, 0
      %v202 = vsel %vm164, %v159, 0
      %v205 = vsel %vm164, %v160, 0
      %v208 = vsel %vm164, %v161, 0
      %v211 = vsel %vm164, %v162, 0
      %vm213 = vcmask 1043456
      %v215 = vsel %vm213, %v163, 0
      %217 = vmatprep.subr.mxu0 0.0
      %218 = vmatpush1.msra.mxu0 %v215
      %219 = vmatprep.subr.mxu0 0.0
      %220 = vmatpush1.msra.mxu0 0.0
      %221 = vmatprep.subr.mxu0 0.0
      %222 = vmatpush1.msra.mxu0 0.0
      %223 = vmatprep.subr.mxu0 0.0
      %224 = vmatpush1.msra.mxu0 0.0
      %225 = vmatprep.subr.mxu0 0.0
      %226 = vmatpush1.msra.mxu0 0.0
      %227 = vmatprep.subr.mxu0 0.0
      %228 = vmatpush1.msra.mxu0 0.0
      %229 = vmatprep.subr.mxu0 0.0
      %230 = vmatpush1.msra.mxu0 0.0
      %231 = vmatprep.subr.mxu0 0.0
      %232 = vmatpush1.msra.mxu0 0.0
      %233 = vmatprep.subr.mxu0 0.0
      %234 = vmatpush1.msra.mxu0 0.0
      %235 = vmatprep.subr.mxu0 0.0
      %236 = vmatpush1.msra.mxu0 0.0
      %237 = vmatprep.subr.mxu0 0.0
      %238 = vmatpush1.msra.mxu0 0.0
      %239 = vmatprep.subr.mxu0 0.0
      %240 = vmatpush1.msra.mxu0 0.0
      %241 = vmatprep.subr.mxu0 0.0
      %242 = vmatpush1.msra.mxu0 0.0
      %243 = vmatprep.subr.mxu0 0.0
      %244 = vmatpush1.msra.mxu0 0.0
      %245 = vmatprep.subr.mxu0 0.0
      %246 = vmatpush1.msra.mxu0 0.0
      %247 = vmatprep.subr.mxu0 0.0
      %248 = vmatpush1.msra.mxu0 0.0
      %249 = vmatprep.subr.mxu0 0.0
      %250 = vmatpush1.msra.mxu0 0.0
      %251 = vmatprep.subr.mxu0 0.0
      %252 = vmatpush1.msra.mxu0 0.0
      %253 = vmatprep.subr.mxu0 0.0
      %254 = vmatpush1.msra.mxu0 0.0
      %255 = vmatprep.subr.mxu0 0.0
      %256 = vmatpush1.msra.mxu0 0.0
      %257 = vmatprep.subr.mxu0 0.0
      %258 = vmatpush1.msra.mxu0 0.0
      %259 = vmatprep.subr.mxu0 0.0
      %260 = vmatpush1.msra.mxu0 0.0
      %261 = vmatprep.subr.mxu0 0.0
      %262 = vmatpush1.msra.mxu0 0.0
      %263 = vmatprep.subr.mxu0 0.0
      %264 = vmatpush1.msra.mxu0 0.0
      %265 = vmatprep.subr.mxu0 0.0
      %266 = vmatpush1.msra.mxu0 0.0
      %267 = vmatprep.subr.mxu0 0.0
      %268 = vmatpush1.msra.mxu0 0.0
      %269 = vmatprep.subr.mxu0 0.0
      %270 = vmatpush1.msra.mxu0 0.0
      %271 = vmatprep.subr.mxu0 0.0
      %272 = vmatpush1.msra.mxu0 0.0
      %273 = vmatprep.subr.mxu0 0.0
      %274 = vmatpush1.msra.mxu0 0.0
      %275 = vmatprep.subr.mxu0 0.0
      %276 = vmatpush1.msra.mxu0 0.0
      %277 = vmatprep.subr.mxu0 0.0
      %278 = vmatpush1.msra.mxu0 0.0
      %279 = vmatprep.subr.mxu0 0.0
      %280 = vmatpush1.msra.mxu0 0.0
      %281 = vmatprep.mubr.f32.mxu0 0.0
      %282 = vmatmul.mubr.f32.gmra.mrb[0].mxu0 %v166
      %v283 = vpop.f32.mrb[0].mxu0
      %v284 = vadd.f32 0.0, %v283
      %v285 = vpop.f32.mrb[0].mxu0
      %286 = vmatprep.mubr.f32.mxu0 0.0
      %287 = vmatmul.mubr.f32.gmra.mrb[0].mxu0 %v169
      %v288 = vpop.f32.mrb[0].mxu0
      %v289 = vadd.f32 0.0, %v288
      %v290 = vpop.f32.mrb[0].mxu0
      %291 = vmatprep.mubr.f32.mxu0 0.0
      %292 = vmatmul.mubr.f32.gmra.mrb[0].mxu0 %v172
      %v293 = vpop.f32.mrb[0].mxu0
      %v294 = vadd.f32 0.0, %v293
      %v295 = vpop.f32.mrb[0].mxu0
      %296 = vmatprep.mubr.f32.mxu0 0.0
      %297 = vmatmul.mubr.f32.gmra.mrb[0].mxu0 %v175
      %v298 = vpop.f32.mrb[0].mxu0
      %v299 = vadd.f32 0.0, %v298
      %v300 = vpop.f32.mrb[0].mxu0
      %301 = vmatprep.mubr.f32.mxu0 0.0
      %302 = vmatmul.mubr.f32.gmra.mrb[0].mxu0 %v178
      %v303 = vpop.f32.mrb[0].mxu0
      %v304 = vadd.f32 0.0, %v303
      %v305 = vpop.f32.mrb[0].mxu0
      %306 = vmatprep.mubr.f32.mxu0 0.0
      %307 = vmatmul.mubr.f32.gmra.mrb[0].mxu0 %v181
      %v308 = vpop.f32.mrb[0].mxu0
      %v309 = vadd.f32 0.0, %v308
      %v310 = vpop.f32.mrb[0].mxu0
      %311 = vmatprep.mubr.f32.mxu0 0.0
      %312 = vmatmul.mubr.f32.gmra.mrb[0].mxu0 %v184
      %v313 = vpop.f32.mrb[0].mxu0
      %v314 = vadd.f32 0.0, %v313
      %v315 = vpop.f32.mrb[0].mxu0
      %316 = vmatprep.mubr.f32.mxu0 0.0
      %317 = vmatmul.mubr.f32.gmra.mrb[0].mxu0 %v187
      %v318 = vpop.f32.mrb[0].mxu0
      %v319 = vadd.f32 0.0, %v318
      %v320 = vpop.f32.mrb[0].mxu0
      %321 = vmatprep.mubr.f32.mxu0 0.0
      %322 = vmatmul.mubr.f32.gmra.mrb[0].mxu0 %v190
      %v323 = vpop.f32.mrb[0].mxu0
      %v324 = vadd.f32 0.0, %v323
      %v325 = vpop.f32.mrb[0].mxu0
      %326 = vmatprep.mubr.f32.mxu0 0.0
      %327 = vmatmul.mubr.f32.gmra.mrb[0].mxu0 %v193
      %v328 = vpop.f32.mrb[0].mxu0
      %v329 = vadd.f32 0.0, %v328
      %v330 = vpop.f32.mrb[0].mxu0
      %331 = vmatprep.mubr.f32.mxu0 0.0
      %332 = vmatmul.mubr.f32.gmra.mrb[0].mxu0 %v196
      %v333 = vpop.f32.mrb[0].mxu0
      %v334 = vadd.f32 0.0, %v333
      %v335 = vpop.f32.mrb[0].mxu0
      %336 = vmatprep.mubr.f32.mxu0 0.0
      %337 = vmatmul.mubr.f32.gmra.mrb[0].mxu0 %v199
      %v338 = vpop.f32.mrb[0].mxu0
      %v339 = vadd.f32 0.0, %v338
      %v340 = vpop.f32.mrb[0].mxu0
      %341 = vmatprep.mubr.f32.mxu0 0.0
      %342 = vmatmul.mubr.f32.gmra.mrb[0].mxu0 %v202
      %v343 = vpop.f32.mrb[0].mxu0
      %v344 = vadd.f32 0.0, %v343
      %v345 = vpop.f32.mrb[0].mxu0
      %346 = vmatprep.mubr.f32.mxu0 0.0
      %347 = vmatmul.mubr.f32.gmra.mrb[0].mxu0 %v205
      %v348 = vpop.f32.mrb[0].mxu0
      %v349 = vadd.f32 0.0, %v348
      %v350 = vpop.f32.mrb[0].mxu0
      %351 = vmatprep.mubr.f32.mxu0 0.0
      %352 = vmatmul.mubr.f32.gmra.mrb[0].mxu0 %v208
      %v353 = vpop.f32.mrb[0].mxu0
      %v354 = vadd.f32 0.0, %v353
      %v355 = vpop.f32.mrb[0].mxu0
      %356 = vmatprep.mubr.f32.mxu0 0.0
      %357 = vmatmul.mubr.f32.gmra.mrb[0].mxu0 %v211
      %v358 = vpop.f32.mrb[0].mxu0
      %v359 = vadd.f32 0.0, %v358
      %v360 = vpop.f32.mrb[0].mxu0
      %361 = vdwg.mxu0
      %vm362 = vcmask 64512
      %363 = vst.msk [vmem:[%s145] sm:$0xff] %vm362, %v284
      %364 = vst.msk [vmem:[%s145 + $0x8] sm:$0xff] %vm362, %v289
      %365 = vst.msk [vmem:[%s145 + $0x10] sm:$0xff] %vm362, %v294
      %366 = vst.msk [vmem:[%s145 + $0x18] sm:$0xff] %vm362, %v299
      %367 = vst.msk [vmem:[%s145 + $0x20] sm:$0xff] %vm362, %v304
      %368 = vst.msk [vmem:[%s145 + $0x28] sm:$0xff] %vm362, %v309
      %369 = vst.msk [vmem:[%s145 + $0x30] sm:$0xff] %vm362, %v314
      %370 = vst.msk [vmem:[%s145 + $0x38] sm:$0xff] %vm362, %v319
      %371 = vst.msk [vmem:[%s145 + $0x40] sm:$0xff] %vm362, %v324
      %372 = vst.msk [vmem:[%s145 + $0x48] sm:$0xff] %vm362, %v329
      %373 = vst.msk [vmem:[%s145 + $0x50] sm:$0xff] %vm362, %v334
      %374 = vst.msk [vmem:[%s145 + $0x58] sm:$0xff] %vm362, %v339
      %375 = vst.msk [vmem:[%s145 + $0x60] sm:$0xff] %vm362, %v344
      %376 = vst.msk [vmem:[%s145 + $0x68] sm:$0xff] %vm362, %v349
      %377 = vst.msk [vmem:[%s145 + $0x70] sm:$0xff] %vm362, %v354
      %378 = vst.msk [vmem:[%s145 + $0x78] sm:$0xff] %vm362, %v359
      %s379 = smul.u32 16, %s13
      %p380 = scmp.lt.s32.totalorder %s379, 63
      %s381 = scalar_select %p380, %s379, 63
      %s382 = smul.addr %s381, 8
      %s383 = scalar_lea.vmem %s2, %s382
      // Predicated region
      $region29: #{tpu_custom_call.1} parent=27 // pred_check
        %p384 = pneg %p78
      $region30: #{tpu_custom_call.1} parent=27 // pred_check_branch
        %386 = sbr.rel (%p384) target = $region32
      $region31: #{tpu_custom_call.1} parent=27 // pred_region
        %s387 = smul.u32 16, %s13
      $region32: #{tpu_custom_call.1} parent=27 // pred_fallthru
        _
    $region28: #{tpu_custom_call.1} parent=5 // pred_fallthru
      _
    %p388 = scmp.le.s32.totalorder 2, %s8
    // Predicated region
    $region33: #{tpu_custom_call.1} parent=5 // pred_check
      %p389 = pneg %p388
    $region34: #{tpu_custom_call.1} parent=5 // pred_check_branch
      %391 = sbr.rel (%p389) target = $region36
    $region35: #{tpu_custom_call.1} parent=5 // pred_region
      %s392 = ssub.s32 %s8, 2
      // Predicated region
      $region37: #{tpu_custom_call.1} parent=35 // pred_check
        %p393 = pneg %p84
      $region38: #{tpu_custom_call.1} parent=35 // pred_check_branch
        %395 = sbr.rel (%p393) target = $region40
      $region39: #{tpu_custom_call.1} parent=35 // pred_region
        %s396 = smul.u32 16, %s14
        %p397 = scmp.lt.s32.totalorder %s396, 63
        %s398 = scalar_select %p397, %s396, 63
        %s399 = smul.addr %s398, 8
        %s400 = scalar_lea.vmem %s2, %s399
      $region40: #{tpu_custom_call.1} parent=35 // pred_fallthru
        _
    $region36: #{tpu_custom_call.1} parent=5 // pred_fallthru
      _
  $region6: #{tpu_custom_call.1} parent=0 // loop_footer
    %s12 = sadd.s32 1, %s8
  $region7: #{tpu_custom_call.1} parent=0 // loop_footer_branch
    %7 = sbr.rel target = $region3
  $region8: #{tpu_custom_call.1} parent=0 // loop_exit
    _

</llo_original>
